<compile_context>
chip_gen: v7x
topology: tpu7x:2x2x1
jax: 0.10.0
libtpu: 0.0.40
codegen_flags: <defaults>
</compile_context>

<pallas_src>
import functools

import jax
import jax.numpy as jnp
from jax.experimental import pallas as pl
from jax.experimental.pallas import tpu as pltpu

EPS = 1e-5


def _round_up(v, m):
    return (v + m - 1) // m * m


# ---------------------------------------------------------------------------
# Pass 1: per-channel statistics -> fused (scale, shift)
# ---------------------------------------------------------------------------
def _stats_kernel(x_ref, g_ref, b_ref, scale_ref, shift_ref, sum_ref, sq_ref,
                  *, inv_n, eps):
    # grid = (nc, nr): channel tiles outer ("parallel"), row tiles inner ("arbitrary").
    r = pl.program_id(1)

    @pl.when(r == 0)
    def _init():
        sum_ref[...] = jnp.zeros_like(sum_ref)
        sq_ref[...] = jnp.zeros_like(sq_ref)

    x = x_ref[...].astype(jnp.float32)                     # (TN, TC)
    sum_ref[...] += jnp.sum(x, axis=0, keepdims=True)       # (1, TC)
    sq_ref[...] += jnp.sum(x * x, axis=0, keepdims=True)    # (1, TC)

    @pl.when(r == pl.num_programs(1) - 1)
    def _finalize():
        mean = sum_ref[...] * inv_n
        ex2 = sq_ref[...] * inv_n
        var = jnp.maximum(ex2 - mean * mean, 0.0)            # biased variance
        inv_std = jax.lax.rsqrt(var + eps)
        scale = g_ref[...] * inv_std                          # gamma / sqrt(var + eps)
        shift = b_ref[...] - mean * scale                     # beta - mean * scale
        scale_ref[...] = scale
        shift_ref[...] = shift


# ---------------------------------------------------------------------------
# Pass 2: y = x * scale + shift
# ---------------------------------------------------------------------------
def _norm_kernel(x_ref, scale_ref, shift_ref, o_ref):
    x = x_ref[...].astype(jnp.float32)
    o_ref[...] = (x * scale_ref[...] + shift_ref[...]).astype(o_ref.dtype)


# ---------------------------------------------------------------------------
# Wrapper
# ---------------------------------------------------------------------------
@functools.partial(jax.jit, static_argnames=("eps",))
def batchnorm1d_forward(x, gamma, beta, eps=EPS):
    """x: (B, T, C). Returns (B, T, C), batch-normalized over the channel dim C."""
    B, T, C = x.shape
    N = B * T
    out_dtype = x.dtype

    # Lane-dense channel padding and row tiling.
    if C > 512:
        C_pad = _round_up(C, 512)
        TC = 512
    else:
        C_pad = _round_up(C, 128)
        TC = C_pad
    TN = min(512, _round_up(N, 8))
    N_pad = _round_up(N, TN)

    nc = C_pad // TC
    nr = N_pad // TN

    x2d = x.reshape(N, C)
    x2d = jnp.pad(x2d, ((0, N_pad - N), (0, C_pad - C)))          # zero rows/cols: no effect on sums
    g2d = jnp.pad(gamma.reshape(1, C).astype(jnp.float32), ((0, 0), (0, C_pad - C)))
    b2d = jnp.pad(beta.reshape(1, C).astype(jnp.float32), ((0, 0), (0, C_pad - C)))

    # ---- Pass 1: statistics -> fused scale/shift -----------------------------------
    scale, shift = pl.pallas_call(
        functools.partial(_stats_kernel, inv_n=1.0 / N, eps=eps),
        out_shape=(
            jax.ShapeDtypeStruct((1, C_pad), jnp.float32),
            jax.ShapeDtypeStruct((1, C_pad), jnp.float32),
        ),
        grid_spec=pltpu.PrefetchScalarGridSpec(
            num_scalar_prefetch=0,
            grid=(nc, nr),
            in_specs=[
                pl.BlockSpec((TN, TC), lambda c, r: (r, c)),      # x: streamed row tiles
                pl.BlockSpec((1, TC), lambda c, r: (0, c)),       # gamma: resident across rows
                pl.BlockSpec((1, TC), lambda c, r: (0, c)),       # beta:  resident across rows
            ],
            out_specs=[
                pl.BlockSpec((1, TC), lambda c, r: (0, c)),       # scale (written at finalize)
                pl.BlockSpec((1, TC), lambda c, r: (0, c)),       # shift (written at finalize)
            ],
            scratch_shapes=[
                pltpu.VMEM((1, TC), jnp.float32),                 # running sum
                pltpu.VMEM((1, TC), jnp.float32),                 # running sum of squares
            ],
        ),
        compiler_params=pltpu.CompilerParams(
            dimension_semantics=("parallel", "arbitrary"),
        ),
    )(x2d, g2d, b2d)

    # ---- Pass 2: normalize (pure streaming, both axes parallel) ----------------------
    y2d = pl.pallas_call(
        _norm_kernel,
        out_shape=jax.ShapeDtypeStruct((N_pad, C_pad), out_dtype),
        grid_spec=pltpu.PrefetchScalarGridSpec(
            num_scalar_prefetch=0,
            grid=(nr, nc),
            in_specs=[
                pl.BlockSpec((TN, TC), lambda r, c: (r, c)),      # x tile
                pl.BlockSpec((1, TC), lambda r, c: (0, c)),       # scale: resident across rows
                pl.BlockSpec((1, TC), lambda r, c: (0, c)),       # shift: resident across rows
            ],
            out_specs=pl.BlockSpec((TN, TC), lambda r, c: (r, c)),
        ),
        compiler_params=pltpu.CompilerParams(
            dimension_semantics=("parallel", "parallel"),
        ),
        input_output_aliases={0: 0},                              # reuse padded x buffer
    )(x2d, scale, shift)

    return y2d[:N, :C].reshape(B, T, C)


# ---------------------------------------------------------------------------
# Pure-JAX reference of the same semantics
# ---------------------------------------------------------------------------
def _reference(x, gamma, beta, eps=EPS):
    xf = x.astype(jnp.float32)
    mean = jnp.mean(xf, axis=(0, 1), keepdims=True)
    var = jnp.mean((xf - mean) ** 2, axis=(0, 1), keepdims=True)   # biased variance
    y = (xf - mean) / jnp.sqrt(var + eps) * gamma + beta
    return y.astype(x.dtype)


if __name__ == "__main__":
    key = jax.random.PRNGKey(0)
    kx, kg, kb = jax.random.split(key, 3)

    B, T, C = 2, 8, 32  # (batch, time, channels); input_size = C
    x = jax.random.normal(kx, (B, T, C), dtype=jnp.float32)

    # Deterministic affine parameters (perturbed from the PyTorch default ones/zeros
    # so the affine path is exercised).
    gamma = jnp.ones((C,), jnp.float32) + 0.1 * jax.random.normal(kg, (C,), jnp.float32)
    beta = 0.1 * jax.random.normal(kb, (C,), jnp.float32)

    out = batchnorm1d_forward(x, gamma, beta)
    out = jax.block_until_ready(out)

    ref = _reference(x, gamma, beta)
    assert out.shape == (B, T, C)
    assert jnp.allclose(out, ref, atol=1e-4, rtol=1e-4), "mismatch vs reference"

    print("KERNEL_OK")
</pallas_src>

<mosaic_0001>
module attributes {stable_mosaic.version = 11 : i64} {
  func.func @_stats_kernel(%arg0: i32, %arg1: i32, %arg2: memref<16x128xf32, #tpu.memory_space<vmem>>, %arg3: memref<1x128xf32, #tpu.memory_space<vmem>>, %arg4: memref<1x128xf32, #tpu.memory_space<vmem>>, %arg5: memref<1x128xf32, #tpu.memory_space<vmem>>, %arg6: memref<1x128xf32, #tpu.memory_space<vmem>>, %arg7: memref<1x128xf32, #tpu.memory_space<vmem>>, %arg8: memref<1x128xf32, #tpu.memory_space<vmem>>) attributes {dimension_semantics = [#tpu.dimension_semantics<parallel>, #tpu.dimension_semantics<arbitrary>], iteration_bounds = array<i64: 1, 1>, scalar_prefetch = 0 : i64, scratch_operands = 2 : i64, tpu.core_type = #tpu.core_type<tc>, window_params = [{transform_indices = @transform_0, window_bounds = array<i64: 16, 128>}, {transform_indices = @transform_1, window_bounds = array<i64: 1, 128>}, {transform_indices = @transform_2, window_bounds = array<i64: 1, 128>}, {transform_indices = @transform_3, window_bounds = array<i64: 1, 128>}, {transform_indices = @transform_4, window_bounds = array<i64: 1, 128>}]} {
    %c0_i32 = arith.constant 0 : i32
    %0 = arith.cmpi eq, %arg1, %c0_i32 : i32
    %1 = arith.extui %0 : i1 to i32
    %c0_i32_0 = arith.constant 0 : i32
    %2 = arith.cmpi ne, %1, %c0_i32_0 : i32
    scf.if %2 {
      %cst_13 = arith.constant 0.000000e+00 : f32
      %18 = vector.broadcast %cst_13 : f32 to vector<1x128xf32>
      %c0_14 = arith.constant 0 : index
      %c0_15 = arith.constant 0 : index
      %19 = vector.load %arg7[%c0_14, %c0_15] : memref<1x128xf32, #tpu.memory_space<vmem>>, vector<1x128xf32>
      tpu.vector_store %arg7[%c0_14, %c0_15], %18 {strides = array<i32>} : memref<1x128xf32, #tpu.memory_space<vmem>>, vector<1x128xf32>,
      %cst_16 = arith.constant 0.000000e+00 : f32
      %20 = vector.broadcast %cst_16 : f32 to vector<1x128xf32>
      %c0_17 = arith.constant 0 : index
      %c0_18 = arith.constant 0 : index
      %21 = vector.load %arg8[%c0_17, %c0_18] : memref<1x128xf32, #tpu.memory_space<vmem>>, vector<1x128xf32>
      tpu.vector_store %arg8[%c0_17, %c0_18], %20 {strides = array<i32>} : memref<1x128xf32, #tpu.memory_space<vmem>>, vector<1x128xf32>,
    } else {
    }
    %c0 = arith.constant 0 : index
    %c0_1 = arith.constant 0 : index
    %3 = vector.load %arg2[%c0, %c0_1] : memref<16x128xf32, #tpu.memory_space<vmem>>, vector<16x128xf32>
    %c0_2 = arith.constant 0 : index
    %c0_3 = arith.constant 0 : index
    %4 = vector.load %arg7[%c0_2, %c0_3] : memref<1x128xf32, #tpu.memory_space<vmem>>, vector<1x128xf32>
    %cst = arith.constant dense<0.000000e+00> : vector<128xf32>
    %5 = vector.multi_reduction <add>, %3, %cst [0] : vector<16x128xf32> to vector<128xf32>
    %6 = vector.shape_cast %5 : vector<128xf32> to vector<1x128xf32>
    %7 = arith.addf %4, %6 : vector<1x128xf32>
    %c0_4 = arith.constant 0 : index
    %c0_5 = arith.constant 0 : index
    %8 = vector.load %arg7[%c0_4, %c0_5] : memref<1x128xf32, #tpu.memory_space<vmem>>, vector<1x128xf32>
    tpu.vector_store %arg7[%c0_4, %c0_5], %7 {strides = array<i32>} : memref<1x128xf32, #tpu.memory_space<vmem>>, vector<1x128xf32>,
    %c0_6 = arith.constant 0 : index
    %c0_7 = arith.constant 0 : index
    %9 = vector.load %arg8[%c0_6, %c0_7] : memref<1x128xf32, #tpu.memory_space<vmem>>, vector<1x128xf32>
    %10 = arith.mulf %3, %3 : vector<16x128xf32>
    %cst_8 = arith.constant dense<0.000000e+00> : vector<128xf32>
    %11 = vector.multi_reduction <add>, %10, %cst_8 [0] : vector<16x128xf32> to vector<128xf32>
    %12 = vector.shape_cast %11 : vector<128xf32> to vector<1x128xf32>
    %13 = arith.addf %9, %12 : vector<1x128xf32>
    %c0_9 = arith.constant 0 : index
    %c0_10 = arith.constant 0 : index
    %14 = vector.load %arg8[%c0_9, %c0_10] : memref<1x128xf32, #tpu.memory_space<vmem>>, vector<1x128xf32>
    tpu.vector_store %arg8[%c0_9, %c0_10], %13 {strides = array<i32>} : memref<1x128xf32, #tpu.memory_space<vmem>>, vector<1x128xf32>,
    %c0_i32_11 = arith.constant 0 : i32
    %15 = arith.cmpi eq, %arg1, %c0_i32_11 : i32
    %16 = arith.extui %15 : i1 to i32
    %c0_i32_12 = arith.constant 0 : i32
    %17 = arith.cmpi ne, %16, %c0_i32_12 : i32
    scf.if %17 {
      %c0_13 = arith.constant 0 : index
      %c0_14 = arith.constant 0 : index
      %18 = vector.load %arg7[%c0_13, %c0_14] : memref<1x128xf32, #tpu.memory_space<vmem>>, vector<1x128xf32>
      %cst_15 = arith.constant 6.250000e-02 : f32
      %19 = vector.broadcast %cst_15 : f32 to vector<1x128xf32>
      %20 = arith.mulf %18, %19 : vector<1x128xf32>
      %c0_16 = arith.constant 0 : index
      %c0_17 = arith.constant 0 : index
      %21 = vector.load %arg8[%c0_16, %c0_17] : memref<1x128xf32, #tpu.memory_space<vmem>>, vector<1x128xf32>
      %cst_18 = arith.constant 6.250000e-02 : f32
      %22 = vector.broadcast %cst_18 : f32 to vector<1x128xf32>
      %23 = arith.mulf %21, %22 : vector<1x128xf32>
      %24 = arith.mulf %20, %20 : vector<1x128xf32>
      %25 = arith.subf %23, %24 : vector<1x128xf32>
      %cst_19 = arith.constant 0.000000e+00 : f32
      %26 = vector.broadcast %cst_19 : f32 to vector<1x128xf32>
      %27 = arith.maximumf %25, %26 : vector<1x128xf32>
      %cst_20 = arith.constant 9.99999974E-6 : f32
      %28 = vector.broadcast %cst_20 : f32 to vector<1x128xf32>
      %29 = arith.addf %27, %28 : vector<1x128xf32>
      %30 = math.rsqrt %29 : vector<1x128xf32>
      %c0_21 = arith.constant 0 : index
      %c0_22 = arith.constant 0 : index
      %31 = vector.load %arg3[%c0_21, %c0_22] : memref<1x128xf32, #tpu.memory_space<vmem>>, vector<1x128xf32>
      %32 = arith.mulf %31, %30 : vector<1x128xf32>
      %c0_23 = arith.constant 0 : index
      %c0_24 = arith.constant 0 : index
      %33 = vector.load %arg4[%c0_23, %c0_24] : memref<1x128xf32, #tpu.memory_space<vmem>>, vector<1x128xf32>
      %34 = arith.mulf %20, %32 : vector<1x128xf32>
      %35 = arith.subf %33, %34 : vector<1x128xf32>
      %c0_25 = arith.constant 0 : index
      %c0_26 = arith.constant 0 : index
      %36 = vector.load %arg5[%c0_25, %c0_26] : memref<1x128xf32, #tpu.memory_space<vmem>>, vector<1x128xf32>
      tpu.vector_store %arg5[%c0_25, %c0_26], %32 {strides = array<i32>} : memref<1x128xf32, #tpu.memory_space<vmem>>, vector<1x128xf32>,
      %c0_27 = arith.constant 0 : index
      %c0_28 = arith.constant 0 : index
      %37 = vector.load %arg6[%c0_27, %c0_28] : memref<1x128xf32, #tpu.memory_space<vmem>>, vector<1x128xf32>
      tpu.vector_store %arg6[%c0_27, %c0_28], %35 {strides = array<i32>} : memref<1x128xf32, #tpu.memory_space<vmem>>, vector<1x128xf32>,
    } else {
    }
    return
  }
  func.func @transform_0(%arg0: i32, %arg1: i32) -> (i32, i32) {
    %c0_i32 = arith.constant 0 : i32
    return %arg1, %arg0 : i32, i32
  }
  func.func @transform_1(%arg0: i32, %arg1: i32) -> (i32, i32) {
    %c0_i32 = arith.constant 0 : i32
    %c0_i32_0 = arith.constant 0 : i32
    return %c0_i32, %arg0 : i32, i32
  }
  func.func @transform_2(%arg0: i32, %arg1: i32) -> (i32, i32) {
    %c0_i32 = arith.constant 0 : i32
    %c0_i32_0 = arith.constant 0 : i32
    return %c0_i32, %arg0 : i32, i32
  }
  func.func @transform_3(%arg0: i32, %arg1: i32) -> (i32, i32) {
    %c0_i32 = arith.constant 0 : i32
    %c0_i32_0 = arith.constant 0 : i32
    return %c0_i32, %arg0 : i32, i32
  }
  func.func @transform_4(%arg0: i32, %arg1: i32) -> (i32, i32) {
    %c0_i32 = arith.constant 0 : i32
    %c0_i32_0 = arith.constant 0 : i32
    return %c0_i32, %arg0 : i32, i32
  }
}

module attributes {stable_mosaic.version = 11 : i64} {
  func.func @_norm_kernel(%arg0: i32, %arg1: i32, %arg2: memref<16x128xf32, #tpu.memory_space<vmem>>, %arg3: memref<1x128xf32, #tpu.memory_space<vmem>>, %arg4: memref<1x128xf32, #tpu.memory_space<vmem>>, %arg5: memref<16x128xf32, #tpu.memory_space<vmem>>) attributes {dimension_semantics = [#tpu.dimension_semantics<parallel>, #tpu.dimension_semantics<parallel>], iteration_bounds = array<i64: 1, 1>, scalar_prefetch = 0 : i64, scratch_operands = 0 : i64, tpu.core_type = #tpu.core_type<tc>, window_params = [{transform_indices = @transform_0, window_bounds = array<i64: 16, 128>}, {transform_indices = @transform_1, window_bounds = array<i64: 1, 128>}, {transform_indices = @transform_2, window_bounds = array<i64: 1, 128>}, {transform_indices = @transform_3, window_bounds = array<i64: 16, 128>}]} {
    %c0 = arith.constant 0 : index
    %c0_0 = arith.constant 0 : index
    %0 = vector.load %arg2[%c0, %c0_0] : memref<16x128xf32, #tpu.memory_space<vmem>>, vector<16x128xf32>
    %c0_1 = arith.constant 0 : index
    %c0_2 = arith.constant 0 : index
    %1 = vector.load %arg3[%c0_1, %c0_2] : memref<1x128xf32, #tpu.memory_space<vmem>>, vector<1x128xf32>
    %2 = vector.broadcast %1 : vector<1x128xf32> to vector<16x128xf32>
    %3 = arith.mulf %0, %2 : vector<16x128xf32>
    %c0_3 = arith.constant 0 : index
    %c0_4 = arith.constant 0 : index
    %4 = vector.load %arg4[%c0_3, %c0_4] : memref<1x128xf32, #tpu.memory_space<vmem>>, vector<1x128xf32>
    %5 = vector.broadcast %4 : vector<1x128xf32> to vector<16x128xf32>
    %6 = arith.addf %3, %5 : vector<16x128xf32>
    %c0_5 = arith.constant 0 : index
    %c0_6 = arith.constant 0 : index
    %7 = vector.load %arg5[%c0_5, %c0_6] : memref<16x128xf32, #tpu.memory_space<vmem>>, vector<16x128xf32>
    tpu.vector_store %arg5[%c0_5, %c0_6], %6 {strides = array<i32>} : memref<16x128xf32, #tpu.memory_space<vmem>>, vector<16x128xf32>,
    return
  }
  func.func @transform_0(%arg0: i32, %arg1: i32) -> (i32, i32) {
    %c0_i32 = arith.constant 0 : i32
    return %arg0, %arg1 : i32, i32
  }
  func.func @transform_1(%arg0: i32, %arg1: i32) -> (i32, i32) {
    %c0_i32 = arith.constant 0 : i32
    %c0_i32_0 = arith.constant 0 : i32
    return %c0_i32, %arg1 : i32, i32
  }
  func.func @transform_2(%arg0: i32, %arg1: i32) -> (i32, i32) {
    %c0_i32 = arith.constant 0 : i32
    %c0_i32_0 = arith.constant 0 : i32
    return %c0_i32, %arg1 : i32, i32
  }
  func.func @transform_3(%arg0: i32, %arg1: i32) -> (i32, i32) {
    %c0_i32 = arith.constant 0 : i32
    return %arg0, %arg1 : i32, i32
  }
}

</mosaic_0001>

<llo_original>
// kernel: batchnorm1d_forward.2
$region0: #{batchnorm1d_forward.2}
  #allocation0 [shape = 'u32[]', space=smem, size = 0x4, offset = 0x4, fixed_abs, tag = 'smem constant byte address 0x4 - core index']
  #allocation1 [shape = 'u32[144,128]{1,0:T(1,128)}', space=vmem, size = 0x12000, scoped, tag = 'internal scratch']
  #allocation2 [shape = 'f32[1,128]{1,0:T(1,128)}', space=vmem, size = 0x200, scoped, tag = 'scratch operand']
  #allocation3 [shape = 'f32[1,128]{1,0:T(1,128)}', space=vmem, size = 0x200, scoped, tag = 'scratch operand']
  %s0 = inlined_call_operand.vmem [shape: f32[16,128], index: 0, kind: input, shape index: {}]
  %s1 = inlined_call_operand.vmem [shape: f32[1,128], index: 1, kind: input, shape index: {}]
  %s2 = inlined_call_operand.vmem [shape: f32[1,128], index: 2, kind: input, shape index: {}]
  %s3 = inlined_call_operand.vmem [shape: f32[1,128], index: 3, kind: output, shape index: {0}]
  %s4 = inlined_call_operand.vmem [shape: f32[1,128], index: 4, kind: output, shape index: {1}]
  %5 = xla_tuple %s3, %s4
  %s6 = sld [smem:[#allocation0]]
  $region38: #{batchnorm1d_forward.2} parent=0
    _
  %s8 = ssub.s32 1, %s6
  %s9 = scalar_select 0, %s8, %s6
  // Predicated region
  $region2: #{batchnorm1d_forward.2} parent=0 // pred_check
    _
  $region3: #{batchnorm1d_forward.2} parent=0 // pred_check_branch
    %11 = sbr.rel (0) target = $region5
  $region4: #{batchnorm1d_forward.2} parent=0 // pred_region
    _
  $region5: #{batchnorm1d_forward.2} parent=0 // pred_fallthru
    _
  // Predicated region
  $region6: #{batchnorm1d_forward.2} parent=0 // pred_check
    _
  $region7: #{batchnorm1d_forward.2} parent=0 // pred_check_branch
    %13 = sbr.rel (0) target = $region9
  $region8: #{batchnorm1d_forward.2} parent=0 // pred_region
    _
  $region9: #{batchnorm1d_forward.2} parent=0 // pred_fallthru
    _
  // Predicated region
  $region10: #{batchnorm1d_forward.2} parent=0 // pred_check
    _
  $region11: #{batchnorm1d_forward.2} parent=0 // pred_check_branch
    %15 = sbr.rel (0) target = $region13
  $region12: #{batchnorm1d_forward.2} parent=0 // pred_region
    _
  $region13: #{batchnorm1d_forward.2} parent=0 // pred_fallthru
    _
  %p16 = scmp.eq.s32.totalorder 0, 0
  // Predicated region
  $region14: #{batchnorm1d_forward.2} parent=0 // pred_check
    %p17 = pneg %p16
  $region15: #{batchnorm1d_forward.2} parent=0 // pred_check_branch
    %19 = sbr.rel (%p17) target = $region17
  $region16: #{batchnorm1d_forward.2} parent=0 // pred_region
    %20 = vst [vmem:[#allocation2] sm:$0x1] 0.0
    %21 = vst [vmem:[#allocation3] sm:$0x1] 0.0
  $region17: #{batchnorm1d_forward.2} parent=0 // pred_fallthru
    _
  %v22 = vld [vmem:[%s0] sm:$0xff]
  %v23 = vld [vmem:[%s0 + $0x8] sm:$0xff]
  %v24 = vld [vmem:[#allocation2] sm:$0x1]
  %v25 = vadd.f32 %v22, %v23
  %v26 = vrot.slane %v25, 4
  %v27 = vadd.f32 %v25, %v26
  %v28 = vrot.slane %v27, 2
  %v29 = vadd.f32 %v27, %v28
  %v30 = vrot.slane %v29, 1
  %v31 = vadd.f32 %v29, %v30
  %v32 = vadd.f32 %v24, %v31
  %33 = vst [vmem:[#allocation2] sm:$0x1] %v32
  %v34 = vld [vmem:[#allocation3] sm:$0x1]
  %v35 = vmul.f32 %v22, %v22
  %v36 = vmul.f32 %v23, %v23
  %v37 = vadd.f32 %v35, %v36
  %v38 = vrot.slane %v37, 4
  %v39 = vadd.f32 %v37, %v38
  %v40 = vrot.slane %v39, 2
  %v41 = vadd.f32 %v39, %v40
  %v42 = vrot.slane %v41, 1
  %v43 = vadd.f32 %v41, %v42
  %v44 = vadd.f32 %v34, %v43
  %45 = vst [vmem:[#allocation3] sm:$0x1] %v44
  // Predicated region
  $region18: #{batchnorm1d_forward.2} parent=0 // pred_check
    %p46 = pneg %p16
  $region19: #{batchnorm1d_forward.2} parent=0 // pred_check_branch
    %48 = sbr.rel (%p46) target = $region21
  $region20: #{batchnorm1d_forward.2} parent=0 // pred_region
    %v49 = vld [vmem:[#allocation2] sm:$0x1]
    %v50 = vmul.f32 %v49, 0.0625
    %v51 = vld [vmem:[#allocation3] sm:$0x1]
    %v52 = vmul.f32 %v51, 0.0625
    %v53 = vmul.f32 %v50, %v50
    %v54 = vsub.f32 %v52, %v53
    %v55 = vmax.f32 %v54, 0.0
    %v56 = vadd.f32 %v55, 1e-05
    %v57 = vrsqrt.pop %v56
    %v58 = vld [vmem:[%s1] sm:$0x1]
    %v59 = vmul.f32 %v58, %v57
    %v60 = vld [vmem:[%s2] sm:$0x1]
    %v61 = vmul.f32 %v50, %v59
    %v62 = vsub.f32 %v60, %v61
    %63 = vst [vmem:[%s3] sm:$0x1] %v59
    %64 = vst [vmem:[%s4] sm:$0x1] %v62
  $region21: #{batchnorm1d_forward.2} parent=0 // pred_fallthru
    _
  // Predicated region
  $region22: #{batchnorm1d_forward.2} parent=0 // pred_check
    _
  $region23: #{batchnorm1d_forward.2} parent=0 // pred_check_branch
    %66 = sbr.rel (0) target = $region25
  $region24: #{batchnorm1d_forward.2} parent=0 // pred_region
    _
  $region25: #{batchnorm1d_forward.2} parent=0 // pred_fallthru
    _
  // Predicated region
  $region26: #{batchnorm1d_forward.2} parent=0 // pred_check
    _
  $region27: #{batchnorm1d_forward.2} parent=0 // pred_check_branch
    %68 = sbr.rel (0) target = $region29
  $region28: #{batchnorm1d_forward.2} parent=0 // pred_region
    _
  $region29: #{batchnorm1d_forward.2} parent=0 // pred_fallthru
    _
  // Predicated region
  $region30: #{batchnorm1d_forward.2} parent=0 // pred_check
    _
  $region31: #{batchnorm1d_forward.2} parent=0 // pred_check_branch
    %70 = sbr.rel (0) target = $region33
  $region32: #{batchnorm1d_forward.2} parent=0 // pred_region
    _
  $region33: #{batchnorm1d_forward.2} parent=0 // pred_fallthru
    _
  // Predicated region
  $region34: #{batchnorm1d_forward.2} parent=0 // pred_check
    _
  $region35: #{batchnorm1d_forward.2} parent=0 // pred_check_branch
    %72 = sbr.rel (0) target = $region37
  $region36: #{batchnorm1d_forward.2} parent=0 // pred_region
    _
  $region37: #{batchnorm1d_forward.2} parent=0 // pred_fallthru
    _

// kernel: batchnorm1d_forward.3
$region0: #{batchnorm1d_forward.3}
  #allocation0 [shape = 'u32[]', space=smem, size = 0x4, offset = 0x4, fixed_abs, tag = 'smem constant byte address 0x4 - core index']
  #allocation1 [shape = 'u32[144,128]{1,0:T(1,128)}', space=vmem, size = 0x12000, scoped, tag = 'internal scratch']
  %s0 = inlined_call_operand.vmem [shape: f32[16,128], index: 0, kind: input, shape index: {}, may-alias: {0,3}]
  %s1 = inlined_call_operand.vmem [shape: f32[1,128], index: 1, kind: input, shape index: {}]
  %s2 = inlined_call_operand.vmem [shape: f32[1,128], index: 2, kind: input, shape index: {}]
  %s3 = inlined_call_operand.vmem [shape: f32[16,128], index: 3, kind: output, shape index: {}, may-alias: {0,3}]
  %s4 = sld [smem:[#allocation0]]
  $region22: #{batchnorm1d_forward.3} parent=0
    _
  %s6 = ssub.s32 1, %s4
  %s7 = scalar_select 0, %s6, %s4
  // Predicated region
  $region2: #{batchnorm1d_forward.3} parent=0 // pred_check
    _
  $region3: #{batchnorm1d_forward.3} parent=0 // pred_check_branch
    %9 = sbr.rel (0) target = $region5
  $region4: #{batchnorm1d_forward.3} parent=0 // pred_region
    _
  $region5: #{batchnorm1d_forward.3} parent=0 // pred_fallthru
    _
  // Predicated region
  $region6: #{batchnorm1d_forward.3} parent=0 // pred_check
    _
  $region7: #{batchnorm1d_forward.3} parent=0 // pred_check_branch
    %11 = sbr.rel (0) target = $region9
  $region8: #{batchnorm1d_forward.3} parent=0 // pred_region
    _
  $region9: #{batchnorm1d_forward.3} parent=0 // pred_fallthru
    _
  // Predicated region
  $region10: #{batchnorm1d_forward.3} parent=0 // pred_check
    _
  $region11: #{batchnorm1d_forward.3} parent=0 // pred_check_branch
    %13 = sbr.rel (0) target = $region13
  $region12: #{batchnorm1d_forward.3} parent=0 // pred_region
    _
  $region13: #{batchnorm1d_forward.3} parent=0 // pred_fallthru
    _
  %v14 = vld [vmem:[%s0] sm:$0xff]
  %v15 = vld [vmem:[%s0 + $0x8] sm:$0xff]
  %v16 = vld [vmem:[%s1] sm:$0x1]
  %v18 = vlaneseq
  %v19 = vshrl.u32 %v18, 7
  %v20 = vsub.s32 0, %v19
  %v21 = vrot.slane %v16, %v20
  %v23 = vmul.f32 %v14, %v21
  %v24 = vmul.f32 %v15, %v21
  %v25 = vld [vmem:[%s2] sm:$0x1]
  %v27 = vlaneseq
  %v28 = vshrl.u32 %v27, 7
  %v29 = vsub.s32 0, %v28
  %v30 = vrot.slane %v25, %v29
  %v32 = vadd.f32 %v23, %v30
  %v33 = vadd.f32 %v24, %v30
  %34 = vst [vmem:[%s3] sm:$0xff] %v32
  %35 = vst [vmem:[%s3 + $0x8] sm:$0xff] %v33
  // Predicated region
  $region14: #{batchnorm1d_forward.3} parent=0 // pred_check
    _
  $region15: #{batchnorm1d_forward.3} parent=0 // pred_check_branch
    %37 = sbr.rel (0) target = $region17
  $region16: #{batchnorm1d_forward.3} parent=0 // pred_region
    _
  $region17: #{batchnorm1d_forward.3} parent=0 // pred_fallthru
    _
  // Predicated region
  $region18: #{batchnorm1d_forward.3} parent=0 // pred_check
    _
  $region19: #{batchnorm1d_forward.3} parent=0 // pred_check_branch
    %39 = sbr.rel (0) target = $region21
  $region20: #{batchnorm1d_forward.3} parent=0 // pred_region
    _
  $region21: #{batchnorm1d_forward.3} parent=0 // pred_fallthru
    _

</llo_original>
